<compile_context>
chip_gen: v7x
topology: tpu7x:2x2x1
jax: 0.10.0
libtpu: 0.0.40
codegen_flags: <defaults>
</compile_context>

<pallas_src>
import functools

import jax
import jax.numpy as jnp
from jax import lax
from jax.experimental import pallas as pl
from jax.experimental.pallas import tpu as pltpu


def _round_up(a, b):
    return (a + b - 1) // b * b


def _cdiv(a, b):
    return (a + b - 1) // b


def _vmem_cap_bytes():
    """Physical VMEM per TensorCore; conservative fallback if query fails."""
    try:
        return int(pltpu.get_tpu_info().vmem_capacity_bytes)
    except Exception:  # pragma: no cover - defensive fallback
        return 64 << 20  # v7x per-TC size (smallest of current generations)


def _geglu_kernel(x_ref, w_ref, b_ref, o_ref, acc_ref, *, tn):
    # x_ref  : (tm, tk)        bf16
    # w_ref  : (tk, 2*tn)      bf16, columns = [W_h tile | W_g tile]
    # b_ref  : (1, 2*tn)       f32,  [b_h tile | b_g tile]
    # o_ref  : (tm, tn)        output dtype
    # acc_ref: (tm, 2*tn)      f32 accumulator, persists across the K axis
    k = pl.program_id(2)

    @pl.when(k == 0)
    def _():
        acc_ref[...] = jnp.zeros_like(acc_ref)

    acc_ref[...] += jnp.dot(x_ref[...], w_ref[...],
                            preferred_element_type=jnp.float32)

    @pl.when(k == pl.num_programs(2) - 1)
    def _():
        y = acc_ref[...] + b_ref[...]
        h = y[:, :tn]                          # lane-aligned static slices
        g = y[:, tn:]                          # (tn % 128 == 0)
        # Exact GELU: 0.5 * g * (1 + erf(g / sqrt(2)))  (PyTorch default)
        inv_sqrt2 = jnp.float32(0.7071067811865476)
        gelu_g = 0.5 * g * (1.0 + lax.erf(g * inv_sqrt2))
        o_ref[...] = (h * gelu_g).astype(o_ref.dtype)


def prepare_geglu_params(weight, bias, *, tn_max=512, waste_frac=0.10,
                         compute_dtype=jnp.bfloat16):
    """One-time parameter packing (keep OUT of the per-call jitted path).

    weight: [2*dim_out, dim_in] (PyTorch Linear layout), bias: [2*dim_out].
    Returns (w_fused, b_fused, dim_out, tn) where
      w_fused: (k_pad, nt * 2*tn) bf16 with per-N-tile [W_h | W_g] interleave
               (K zero-padded to a multiple of 256),
      b_fused: (1, nt * 2*tn) f32 with the same interleave.
    """
    two_dim_out, dim_in = weight.shape
    dim_out = two_dim_out // 2

    # N tile: largest lane tile whose column-padding waste is small.
    tn = 128
    for cand in (512, 256, 128):
        if cand > tn_max:
            continue
        dop_cand = _round_up(dim_out, cand)
        if cand == 128 or (dop_cand - dim_out) <= waste_frac * dim_out:
            tn = cand
            break
    dop = _round_up(dim_out, tn)
    nt = dop // tn

    # K padded to a multiple of 256: full MXU K-blocks on v6e/v7x (and a
    # multiple of 128 for v5e). Zero rows contribute nothing to the matmul.
    k_pad = _round_up(dim_in, 256)

    pad_n = dop - dim_out
    pad_k = k_pad - dim_in
    wx = jnp.pad(weight[:dim_out, :].T, ((0, pad_k), (0, pad_n)))  # (k_pad, dop)
    wg = jnp.pad(weight[dim_out:, :].T, ((0, pad_k), (0, pad_n)))  # (k_pad, dop)
    bx = jnp.pad(bias[:dim_out], (0, pad_n)).astype(jnp.float32)
    bg = jnp.pad(bias[dim_out:], (0, pad_n)).astype(jnp.float32)

    # Interleave per N-tile: cols [j*2tn : j*2tn+tn]   = W_h tile j,
    #                        cols [j*2tn+tn : (j+1)*2tn] = W_g tile j.
    w_fused = jnp.concatenate(
        [wx.reshape(k_pad, nt, tn), wg.reshape(k_pad, nt, tn)], axis=2
    ).reshape(k_pad, nt * 2 * tn).astype(compute_dtype)
    b_fused = jnp.concatenate(
        [bx.reshape(nt, tn), bg.reshape(nt, tn)], axis=1
    ).reshape(1, nt * 2 * tn)

    return w_fused, b_fused, dim_out, tn


@functools.partial(jax.jit, static_argnames=("dim_out", "tn", "tm_max", "tk_max"))
def geglu_pallas(x, w_fused, b_fused, *, dim_out, tn, tm_max=512, tk_max=1024):
    """x: [..., dim_in]; w_fused / b_fused from prepare_geglu_params."""
    orig_shape = x.shape
    dim_in = orig_shape[-1]
    M = 1
    for d in orig_shape[:-1]:
        M *= int(d)

    k_pad = w_fused.shape[0]
    nt = w_fused.shape[1] // (2 * tn)      # number of N tiles
    dop = nt * tn                          # padded output width
    compute_dtype = w_fused.dtype

    # K tile: divisor of k_pad (k_pad is a multiple of 256).
    if k_pad <= tk_max:
        tk = k_pad
    else:
        tk = 256
        for cand in (1024, 768, 512, 256):
            if cand <= tk_max and k_pad % cand == 0:
                tk = cand
                break
    nk = k_pad // tk

    # Row tile: minimize padding for ragged M, cap at tm_max, multiple of 16.
    n_m = max(1, _cdiv(M, tm_max))
    tm = min(tm_max, max(16, _round_up(_cdiv(M, n_m), 16)))
    # Megacore: guarantee >=2 parallel grid steps when there is enough work.
    if nt * _cdiv(M, tm) < 2 and M >= 32:
        tm = max(16, _round_up(_cdiv(tm, 2), 16))
    M_pad = _round_up(M, tm)
    n_m = M_pad // tm

    # bf16 MXU operands; f32 accumulation happens inside the kernel.
    x2d = x.reshape(M, dim_in).astype(compute_dtype)
    pad_rows = M_pad - M
    pad_cols = k_pad - dim_in
    if pad_rows or pad_cols:
        x2d = jnp.pad(x2d, ((0, pad_rows), (0, pad_cols)))

    # VMEM budget from the real (double-buffered) tile footprint, capped at
    # ~65% of this generation's physical VMEM (v5e/v6e 128 MiB, v7x 64 MiB).
    bpe = jnp.dtype(compute_dtype).itemsize
    out_bpe = jnp.dtype(x.dtype).itemsize
    est = (2 * tm * tk * bpe               # x tiles (double-buffered)
           + 2 * tk * 2 * tn * bpe         # fused W tiles
           + 2 * 2 * tn * 4                # fused bias tiles
           + 2 * tm * tn * out_bpe         # output tiles
           + tm * 2 * tn * 4)              # f32 accumulator scratch
    cap = max(int(0.65 * _vmem_cap_bytes()), 32 << 20)
    vmem_limit = int(min(max(2 * est + (8 << 20), 32 << 20), cap))

    grid = (nt, n_m, nk)                   # N outer, M middle, K inner

    out2d = pl.pallas_call(
        functools.partial(_geglu_kernel, tn=tn),
        out_shape=jax.ShapeDtypeStruct((M_pad, dop), x.dtype),
        grid_spec=pltpu.PrefetchScalarGridSpec(
            num_scalar_prefetch=0,
            grid=grid,
            in_specs=[
                pl.BlockSpec((tm, tk), lambda j, i, k: (i, k)),        # x tile
                pl.BlockSpec((tk, 2 * tn), lambda j, i, k: (k, j)),    # W tile
                pl.BlockSpec((1, 2 * tn), lambda j, i, k: (0, j)),     # bias tile
            ],
            out_specs=pl.BlockSpec((tm, tn), lambda j, i, k: (i, j)),
            scratch_shapes=[pltpu.VMEM((tm, 2 * tn), jnp.float32)],
        ),
        compiler_params=pltpu.CompilerParams(
            dimension_semantics=("parallel", "parallel", "arbitrary"),
            vmem_limit_bytes=vmem_limit,
        ),
    )(x2d, w_fused, b_fused)

    return out2d[:M, :dim_out].reshape(*orig_shape[:-1], dim_out)


def geglu_ref(x, weight, bias):
    """Pure-JAX reference matching PyTorch semantics (f32, highest precision)."""
    proj = jnp.einsum("...d,od->...o", x.astype(jnp.float32),
                      weight.astype(jnp.float32),
                      precision=lax.Precision.HIGHEST) + bias.astype(jnp.float32)
    dim_out = weight.shape[0] // 2
    h, g = proj[..., :dim_out], proj[..., dim_out:]
    gelu = 0.5 * g * (1.0 + lax.erf(g / jnp.sqrt(2.0)))
    return h * gelu


if __name__ == "__main__":
    # Small shapes consistent with the module: batch=2, seq=8, dim_in=32, dim_out=32
    B, S, dim_in, dim_out = 2, 8, 32, 32

    key = jax.random.PRNGKey(0)
    kx, kw, kb, kx2 = jax.random.split(key, 4)

    x = jax.random.normal(kx, (B, S, dim_in), dtype=jnp.float32)
    # Deterministic init of nn.Linear(dim_in, 2*dim_out) parameters.
    bound = 1.0 / (dim_in ** 0.5)
    weight = jax.random.uniform(kw, (2 * dim_out, dim_in),
                                minval=-bound, maxval=bound, dtype=jnp.float32)
    bias = jax.random.uniform(kb, (2 * dim_out,),
                              minval=-bound, maxval=bound, dtype=jnp.float32)

    # One-time parameter packing (outside the jitted per-call path).
    w_fused, b_fused, d_out, tn = prepare_geglu_params(weight, bias)

    out = geglu_pallas(x, w_fused, b_fused, dim_out=d_out, tn=tn)
    jax.block_until_ready(out)
    assert out.shape == (B, S, dim_out)

    # Tight check: reference with the same bf16-rounded operands (isolates the
    # kernel itself; f32 accumulation on both sides).
    ref_bf16_in = geglu_ref(x.astype(jnp.bfloat16), weight.astype(jnp.bfloat16), bias)
    assert jnp.allclose(out, ref_bf16_in, atol=2e-3, rtol=2e-3), "kernel mismatch"
    # Loose check vs. the full-f32 PyTorch-equivalent reference (documents the
    # cost of the intentional bf16 MXU cast).
    ref = geglu_ref(x, weight, bias)
    assert jnp.allclose(out, ref, atol=5e-2, rtol=5e-2), "bf16 drift too large"

    # Ragged token count (exercises the row-padding path, no divisibility assert).
    x2 = jax.random.normal(kx2, (2, 7, dim_in), dtype=jnp.float32)
    out2 = geglu_pallas(x2, w_fused, b_fused, dim_out=d_out, tn=tn)
    jax.block_until_ready(out2)
    assert out2.shape == (2, 7, dim_out)
    ref2_bf16_in = geglu_ref(x2.astype(jnp.bfloat16), weight.astype(jnp.bfloat16), bias)
    assert jnp.allclose(out2, ref2_bf16_in, atol=2e-3, rtol=2e-3), "ragged mismatch"

    print("KERNEL_OK")
</pallas_src>

<mosaic_0001>
module attributes {stable_mosaic.version = 11 : i64} {
  func.func @_geglu_kernel(%arg0: i32, %arg1: i32, %arg2: i32, %arg3: memref<16x256xbf16, #tpu.memory_space<vmem>>, %arg4: memref<256x256xbf16, #tpu.memory_space<vmem>>, %arg5: memref<1x256xf32, #tpu.memory_space<vmem>>, %arg6: memref<16x128xf32, #tpu.memory_space<vmem>>, %arg7: memref<16x256xf32, #tpu.memory_space<vmem>>) attributes {dimension_semantics = [#tpu.dimension_semantics<parallel>, #tpu.dimension_semantics<parallel>, #tpu.dimension_semantics<arbitrary>], iteration_bounds = array<i64: 1, 1, 1>, scalar_prefetch = 0 : i64, scratch_operands = 1 : i64, tpu.core_type = #tpu.core_type<tc>, window_params = [{transform_indices = @transform_0, window_bounds = array<i64: 16, 256>}, {transform_indices = @transform_1, window_bounds = array<i64: 256, 256>}, {transform_indices = @transform_2, window_bounds = array<i64: 1, 256>}, {transform_indices = @transform_3, window_bounds = array<i64: 16, 128>}]} {
    %c0_i32 = arith.constant 0 : i32
    %0 = arith.cmpi eq, %arg2, %c0_i32 : i32
    %1 = arith.extui %0 : i1 to i32
    %c0_i32_0 = arith.constant 0 : i32
    %2 = arith.cmpi ne, %1, %c0_i32_0 : i32
    scf.if %2 {
      %cst_10 = arith.constant 0.000000e+00 : f32
      %12 = vector.broadcast %cst_10 : f32 to vector<16x256xf32>
      %c0_11 = arith.constant 0 : index
      %c0_12 = arith.constant 0 : index
      %13 = vector.load %arg7[%c0_11, %c0_12] : memref<16x256xf32, #tpu.memory_space<vmem>>, vector<16x256xf32>
      tpu.vector_store %arg7[%c0_11, %c0_12], %12 {strides = array<i32>} : memref<16x256xf32, #tpu.memory_space<vmem>>, vector<16x256xf32>,
    } else {
    }
    %c0 = arith.constant 0 : index
    %c0_1 = arith.constant 0 : index
    %3 = vector.load %arg7[%c0, %c0_1] : memref<16x256xf32, #tpu.memory_space<vmem>>, vector<16x256xf32>
    %c0_2 = arith.constant 0 : index
    %c0_3 = arith.constant 0 : index
    %4 = vector.load %arg3[%c0_2, %c0_3] : memref<16x256xbf16, #tpu.memory_space<vmem>>, vector<16x256xbf16>
    %c0_4 = arith.constant 0 : index
    %c0_5 = arith.constant 0 : index
    %5 = vector.load %arg4[%c0_4, %c0_5] : memref<256x256xbf16, #tpu.memory_space<vmem>>, vector<256x256xbf16>
    %cst = arith.constant dense<0.000000e+00> : vector<16x256xf32>
    %6 = tpu.matmul %4, %5, %cst {dimension_numbers = #tpu.dot_dimension_numbers<[1], [0], [0], [1], [0, 0, 1, 1], [], []>} : vector<16x256xbf16>, vector<256x256xbf16>, vector<16x256xf32> -> vector<16x256xf32>
    %7 = arith.addf %3, %6 : vector<16x256xf32>
    %c0_6 = arith.constant 0 : index
    %c0_7 = arith.constant 0 : index
    %8 = vector.load %arg7[%c0_6, %c0_7] : memref<16x256xf32, #tpu.memory_space<vmem>>, vector<16x256xf32>
    tpu.vector_store %arg7[%c0_6, %c0_7], %7 {strides = array<i32>} : memref<16x256xf32, #tpu.memory_space<vmem>>, vector<16x256xf32>,
    %c0_i32_8 = arith.constant 0 : i32
    %9 = arith.cmpi eq, %arg2, %c0_i32_8 : i32
    %10 = arith.extui %9 : i1 to i32
    %c0_i32_9 = arith.constant 0 : i32
    %11 = arith.cmpi ne, %10, %c0_i32_9 : i32
    scf.if %11 {
      %c0_10 = arith.constant 0 : index
      %c0_11 = arith.constant 0 : index
      %12 = vector.load %arg7[%c0_10, %c0_11] : memref<16x256xf32, #tpu.memory_space<vmem>>, vector<16x256xf32>
      %c0_12 = arith.constant 0 : index
      %c0_13 = arith.constant 0 : index
      %13 = vector.load %arg5[%c0_12, %c0_13] : memref<1x256xf32, #tpu.memory_space<vmem>>, vector<1x256xf32>
      %14 = vector.broadcast %13 : vector<1x256xf32> to vector<16x256xf32>
      %15 = arith.addf %12, %14 : vector<16x256xf32>
      %16 = vector.extract_strided_slice %15 {offsets = [0, 0], sizes = [16, 128], strides = [1, 1]} : vector<16x256xf32> to vector<16x128xf32>
      %17 = vector.extract_strided_slice %15 {offsets = [0, 128], sizes = [16, 128], strides = [1, 1]} : vector<16x256xf32> to vector<16x128xf32>
      %cst_14 = arith.constant 5.000000e-01 : f32
      %18 = vector.broadcast %cst_14 : f32 to vector<16x128xf32>
      %19 = arith.mulf %18, %17 : vector<16x128xf32>
      %cst_15 = arith.constant 0.707106769 : f32
      %20 = vector.broadcast %cst_15 : f32 to vector<16x128xf32>
      %21 = arith.mulf %17, %20 : vector<16x128xf32>
      %22 = math.erf %21 : vector<16x128xf32>
      %cst_16 = arith.constant 1.000000e+00 : f32
      %23 = vector.broadcast %cst_16 : f32 to vector<16x128xf32>
      %24 = arith.addf %23, %22 : vector<16x128xf32>
      %25 = arith.mulf %19, %24 : vector<16x128xf32>
      %26 = arith.mulf %16, %25 : vector<16x128xf32>
      %c0_17 = arith.constant 0 : index
      %c0_18 = arith.constant 0 : index
      %27 = vector.load %arg6[%c0_17, %c0_18] : memref<16x128xf32, #tpu.memory_space<vmem>>, vector<16x128xf32>
      tpu.vector_store %arg6[%c0_17, %c0_18], %26 {strides = array<i32>} : memref<16x128xf32, #tpu.memory_space<vmem>>, vector<16x128xf32>,
    } else {
    }
    return
  }
  func.func @transform_0(%arg0: i32, %arg1: i32, %arg2: i32) -> (i32, i32) {
    %c0_i32 = arith.constant 0 : i32
    return %arg1, %arg2 : i32, i32
  }
  func.func @transform_1(%arg0: i32, %arg1: i32, %arg2: i32) -> (i32, i32) {
    %c0_i32 = arith.constant 0 : i32
    return %arg2, %arg0 : i32, i32
  }
  func.func @transform_2(%arg0: i32, %arg1: i32, %arg2: i32) -> (i32, i32) {
    %c0_i32 = arith.constant 0 : i32
    %c0_i32_0 = arith.constant 0 : i32
    return %c0_i32, %arg0 : i32, i32
  }
  func.func @transform_3(%arg0: i32, %arg1: i32, %arg2: i32) -> (i32, i32) {
    %c0_i32 = arith.constant 0 : i32
    return %arg1, %arg0 : i32, i32
  }
}

</mosaic_0001>

<llo_original>
// kernel: geglu_pallas.1
$region0: #{geglu_pallas.1}
  #allocation0 [shape = 'u32[]', space=smem, size = 0x4, offset = 0x4, fixed_abs, tag = 'smem constant byte address 0x4 - core index']
  #allocation1 [shape = 'u32[144,128]{1,0:T(1,128)}', space=vmem, size = 0x12000, scoped, tag = 'internal scratch']
  #allocation2 [shape = 'f32[16,256]{1,0:T(8,128)}', space=vmem, size = 0x4000, scoped, tag = 'scratch operand']
  %s0 = inlined_call_operand.vmem [shape: bf16[16,256], index: 0, kind: input, shape index: {}]
  %s1 = inlined_call_operand.hbm [shape: bf16[256,256], index: 1, kind: input, shape index: {}]
  %s2 = inlined_call_operand.vmem [shape: f32[1,256], index: 2, kind: input, shape index: {}]
  %s3 = inlined_call_operand.vmem [shape: f32[16,128], index: 3, kind: output, shape index: {}]
  %s4 = sld [smem:[#allocation0]]
  $region34: #{geglu_pallas.1} parent=0
    _
  %s6 = ssub.s32 1, %s4
  %s7 = scalar_select 0, %s6, %s4
  $region1: #{geglu_pallas.1} parent=0
    #allocation3 [shape = 'u8[131072]{0}', space=vmem, size = 0x20000, scoped, tag = 'input window, operand 1, single buffered']
    #allocation4 [shape = 's32[1]{0}', space=sflag, size = 0x4, scoped, tag = 'scoped memory for geglu_pallas.1']
    %8 = vsyncpa [#allocation4], 0
    // Predicated region
    $region2: #{geglu_pallas.1} parent=1 // pred_check
      _
    $region3: #{geglu_pallas.1} parent=1 // pred_check_branch
      %10 = sbr.rel (0) target = $region5
    $region4: #{geglu_pallas.1} parent=1 // pred_region
      _
    $region5: #{geglu_pallas.1} parent=1 // pred_fallthru
      _
    // Predicated region
    $region6: #{geglu_pallas.1} parent=1 // pred_check
      _
    $region7: #{geglu_pallas.1} parent=1 // pred_check_branch
      %12 = sbr.rel (0) target = $region9
    $region8: #{geglu_pallas.1} parent=1 // pred_region
      %s14 = ssub.s32 4096, 4096
      %15 = vsyncadd [#allocation4], %s14
      %s16 = sshll.u32 [#allocation3], 4
      %s17 = int_to_ptr.vmem [resolvable:$true] %s16
      %22 = dma.hbm_to_vmem [thread:$0]  %s1, 4096, %s17, [#allocation4], 128, 128, 8
    $region9: #{geglu_pallas.1} parent=1 // pred_fallthru
      _
    // Predicated region
    $region10: #{geglu_pallas.1} parent=1 // pred_check
      _
    $region11: #{geglu_pallas.1} parent=1 // pred_check_branch
      %24 = sbr.rel (0) target = $region13
    $region12: #{geglu_pallas.1} parent=1 // pred_region
      _
    $region13: #{geglu_pallas.1} parent=1 // pred_fallthru
      _
    // Predicated region
    $region14: #{geglu_pallas.1} parent=1 // pred_check
      _
    $region15: #{geglu_pallas.1} parent=1 // pred_check_branch
      %26 = sbr.rel (0) target = $region17
    $region16: #{geglu_pallas.1} parent=1 // pred_region
      %27 = dma.done [#allocation4], 4096
    $region17: #{geglu_pallas.1} parent=1 // pred_fallthru
      _
    %p28 = scmp.eq.s32.totalorder 0, 0
    // Predicated region
    $region18: #{geglu_pallas.1} parent=1 // pred_check
      %p29 = pneg %p28
    $region19: #{geglu_pallas.1} parent=1 // pred_check_branch
      %31 = sbr.rel (%p29) target = $region21
    $region20: #{geglu_pallas.1} parent=1 // pred_region
      %32 = vst [vmem:[#allocation2] sm:$0xff] 0.0
      %33 = vst [vmem:[#allocation2 + $0x8] sm:$0xff] 0.0
      %34 = vst [vmem:[#allocation2 + $0x10] sm:$0xff] 0.0
      %35 = vst [vmem:[#allocation2 + $0x18] sm:$0xff] 0.0
    $region21: #{geglu_pallas.1} parent=1 // pred_fallthru
      _
    %v36 = vld [vmem:[#allocation2] sm:$0xff]
    %v37 = vld [vmem:[#allocation2 + $0x8] sm:$0xff]
    %v38 = vld [vmem:[#allocation2 + $0x10] sm:$0xff]
    %v39 = vld [vmem:[#allocation2 + $0x18] sm:$0xff]
    %v40 = vld [vmem:[%s0] sm:$0xff]
    %v41 = vld [vmem:[%s0 + $0x8] sm:$0xff]
    %v42 = vld [vmem:[#allocation3] sm:$0xff]
    %v43 = vld [vmem:[#allocation3 + $0x8] sm:$0xff]
    %v44 = vld [vmem:[#allocation3 + $0x10] sm:$0xff]
    %v45 = vld [vmem:[#allocation3 + $0x18] sm:$0xff]
    %v46 = vld [vmem:[#allocation3 + $0x20] sm:$0xff]
    %v47 = vld [vmem:[#allocation3 + $0x28] sm:$0xff]
    %v48 = vld [vmem:[#allocation3 + $0x30] sm:$0xff]
    %v49 = vld [vmem:[#allocation3 + $0x38] sm:$0xff]
    %v50 = vld [vmem:[#allocation3 + $0x40] sm:$0xff]
    %v51 = vld [vmem:[#allocation3 + $0x48] sm:$0xff]
    %v52 = vld [vmem:[#allocation3 + $0x50] sm:$0xff]
    %v53 = vld [vmem:[#allocation3 + $0x58] sm:$0xff]
    %v54 = vld [vmem:[#allocation3 + $0x60] sm:$0xff]
    %v55 = vld [vmem:[#allocation3 + $0x68] sm:$0xff]
    %v56 = vld [vmem:[#allocation3 + $0x70] sm:$0xff]
    %v57 = vld [vmem:[#allocation3 + $0x78] sm:$0xff]
    %v58 = vld [vmem:[#allocation3 + $0x80] sm:$0xff]
    %v59 = vld [vmem:[#allocation3 + $0x88] sm:$0xff]
    %v60 = vld [vmem:[#allocation3 + $0x90] sm:$0xff]
    %v61 = vld [vmem:[#allocation3 + $0x98] sm:$0xff]
    %v62 = vld [vmem:[#allocation3 + $0xa0] sm:$0xff]
    %v63 = vld [vmem:[#allocation3 + $0xa8] sm:$0xff]
    %v64 = vld [vmem:[#allocation3 + $0xb0] sm:$0xff]
    %v65 = vld [vmem:[#allocation3 + $0xb8] sm:$0xff]
    %v66 = vld [vmem:[#allocation3 + $0xc0] sm:$0xff]
    %v67 = vld [vmem:[#allocation3 + $0xc8] sm:$0xff]
    %v68 = vld [vmem:[#allocation3 + $0xd0] sm:$0xff]
    %v69 = vld [vmem:[#allocation3 + $0xd8] sm:$0xff]
    %v70 = vld [vmem:[#allocation3 + $0xe0] sm:$0xff]
    %v71 = vld [vmem:[#allocation3 + $0xe8] sm:$0xff]
    %v72 = vld [vmem:[#allocation3 + $0xf0] sm:$0xff]
    %v73 = vld [vmem:[#allocation3 + $0xf8] sm:$0xff]
    %v76 = vunpack.c.l.b16 %v40
    %v77 = vunpack.c.h.b16 %v40
    %v78 = vunpack.c.l.b16 %v41
    %v79 = vunpack.c.h.b16 %v41
    %v80 = vpack.c.b16 %v78, %v76
    %v81 = vpack.c.b16 %v79, %v77
    %v116 = vunpack.c.l.b16 %v42
    %v117 = vunpack.c.h.b16 %v42
    %v118 = vunpack.c.l.b16 %v43
    %v119 = vunpack.c.h.b16 %v43
    %v120 = vunpack.c.l.b16 %v44
    %v121 = vunpack.c.h.b16 %v44
    %v122 = vunpack.c.l.b16 %v45
    %v123 = vunpack.c.h.b16 %v45
    %v124 = vunpack.c.l.b16 %v46
    %v125 = vunpack.c.h.b16 %v46
    %v126 = vunpack.c.l.b16 %v47
    %v127 = vunpack.c.h.b16 %v47
    %v128 = vunpack.c.l.b16 %v48
    %v129 = vunpack.c.h.b16 %v48
    %v130 = vunpack.c.l.b16 %v49
    %v131 = vunpack.c.h.b16 %v49
    %v132 = vunpack.c.l.b16 %v50
    %v133 = vunpack.c.h.b16 %v50
    %v134 = vunpack.c.l.b16 %v51
    %v135 = vunpack.c.h.b16 %v51
    %v136 = vunpack.c.l.b16 %v52
    %v137 = vunpack.c.h.b16 %v52
    %v138 = vunpack.c.l.b16 %v53
    %v139 = vunpack.c.h.b16 %v53
    %v140 = vunpack.c.l.b16 %v54
    %v141 = vunpack.c.h.b16 %v54
    %v142 = vunpack.c.l.b16 %v55
    %v143 = vunpack.c.h.b16 %v55
    %v144 = vunpack.c.l.b16 %v56
    %v145 = vunpack.c.h.b16 %v56
    %v146 = vunpack.c.l.b16 %v57
    %v147 = vunpack.c.h.b16 %v57
    %v148 = vunpack.c.l.b16 %v58
    %v149 = vunpack.c.h.b16 %v58
    %v150 = vunpack.c.l.b16 %v59
    %v151 = vunpack.c.h.b16 %v59
    %v152 = vunpack.c.l.b16 %v60
    %v153 = vunpack.c.h.b16 %v60
    %v154 = vunpack.c.l.b16 %v61
    %v155 = vunpack.c.h.b16 %v61
    %v156 = vunpack.c.l.b16 %v62
    %v157 = vunpack.c.h.b16 %v62
    %v158 = vunpack.c.l.b16 %v63
    %v159 = vunpack.c.h.b16 %v63
    %v160 = vunpack.c.l.b16 %v64
    %v161 = vunpack.c.h.b16 %v64
    %v162 = vunpack.c.l.b16 %v65
    %v163 = vunpack.c.h.b16 %v65
    %v164 = vunpack.c.l.b16 %v66
    %v165 = vunpack.c.h.b16 %v66
    %v166 = vunpack.c.l.b16 %v67
    %v167 = vunpack.c.h.b16 %v67
    %v168 = vunpack.c.l.b16 %v68
    %v169 = vunpack.c.h.b16 %v68
    %v170 = vunpack.c.l.b16 %v69
    %v171 = vunpack.c.h.b16 %v69
    %v172 = vunpack.c.l.b16 %v70
    %v173 = vunpack.c.h.b16 %v70
    %v174 = vunpack.c.l.b16 %v71
    %v175 = vunpack.c.h.b16 %v71
    %v176 = vunpack.c.l.b16 %v72
    %v177 = vunpack.c.h.b16 %v72
    %v178 = vunpack.c.l.b16 %v73
    %v179 = vunpack.c.h.b16 %v73
    %v180 = vpack.c.b16 %v118, %v116
    %v181 = vpack.c.b16 %v119, %v117
    %v182 = vpack.c.b16 %v122, %v120
    %v183 = vpack.c.b16 %v123, %v121
    %v184 = vpack.c.b16 %v126, %v124
    %v185 = vpack.c.b16 %v127, %v125
    %v186 = vpack.c.b16 %v130, %v128
    %v187 = vpack.c.b16 %v131, %v129
    %v188 = vpack.c.b16 %v134, %v132
    %v189 = vpack.c.b16 %v135, %v133
    %v190 = vpack.c.b16 %v138, %v136
    %v191 = vpack.c.b16 %v139, %v137
    %v192 = vpack.c.b16 %v142, %v140
    %v193 = vpack.c.b16 %v143, %v141
    %v194 = vpack.c.b16 %v146, %v144
    %v195 = vpack.c.b16 %v147, %v145
    %v196 = vpack.c.b16 %v150, %v148
    %v197 = vpack.c.b16 %v151, %v149
    %v198 = vpack.c.b16 %v154, %v152
    %v199 = vpack.c.b16 %v155, %v153
    %v200 = vpack.c.b16 %v158, %v156
    %v201 = vpack.c.b16 %v159, %v157
    %v202 = vpack.c.b16 %v162, %v160
    %v203 = vpack.c.b16 %v163, %v161
    %v204 = vpack.c.b16 %v166, %v164
    %v205 = vpack.c.b16 %v167, %v165
    %v206 = vpack.c.b16 %v170, %v168
    %v207 = vpack.c.b16 %v171, %v169
    %v208 = vpack.c.b16 %v174, %v172
    %v209 = vpack.c.b16 %v175, %v173
    %v210 = vpack.c.b16 %v178, %v176
    %v211 = vpack.c.b16 %v179, %v177
    %244 = vmatprep.subr.bf16.mxu0 %v181
    %245 = vmatpush1.bf16.msra.mxu0 %v180
    %246 = vmatprep.subr.bf16.mxu0 %v183
    %247 = vmatpush1.bf16.msra.mxu0 %v182
    %248 = vmatprep.subr.bf16.mxu0 %v185
    %249 = vmatpush1.bf16.msra.mxu0 %v184
    %250 = vmatprep.subr.bf16.mxu0 %v187
    %251 = vmatpush1.bf16.msra.mxu0 %v186
    %252 = vmatprep.subr.bf16.mxu0 %v189
    %253 = vmatpush1.bf16.msra.mxu0 %v188
    %254 = vmatprep.subr.bf16.mxu0 %v191
    %255 = vmatpush1.bf16.msra.mxu0 %v190
    %256 = vmatprep.subr.bf16.mxu0 %v193
    %257 = vmatpush1.bf16.msra.mxu0 %v192
    %258 = vmatprep.subr.bf16.mxu0 %v195
    %259 = vmatpush1.bf16.msra.mxu0 %v194
    %260 = vmatprep.subr.bf16.mxu0 %v197
    %261 = vmatpush1.bf16.msra.mxu0 %v196
    %262 = vmatprep.subr.bf16.mxu0 %v199
    %263 = vmatpush1.bf16.msra.mxu0 %v198
    %264 = vmatprep.subr.bf16.mxu0 %v201
    %265 = vmatpush1.bf16.msra.mxu0 %v200
    %266 = vmatprep.subr.bf16.mxu0 %v203
    %267 = vmatpush1.bf16.msra.mxu0 %v202
    %268 = vmatprep.subr.bf16.mxu0 %v205
    %269 = vmatpush1.bf16.msra.mxu0 %v204
    %270 = vmatprep.subr.bf16.mxu0 %v207
    %271 = vmatpush1.bf16.msra.mxu0 %v206
    %272 = vmatprep.subr.bf16.mxu0 %v209
    %273 = vmatpush1.bf16.msra.mxu0 %v208
    %274 = vmatprep.subr.bf16.mxu0 %v211
    %275 = vmatpush1.bf16.msra.mxu0 %v210
    %276 = vmatprep.mubr.bf16.mxu0 %v81
    %277 = vmatmul.mubr.bf16.gmra.mrb[0].mxu0 %v80
    %v278 = vpop.f32.mrb[0].mxu0
    %v279 = vadd.f32 0.0, %v278
    %v280 = vpop.f32.mrb[0].mxu0
    %v281 = vadd.f32 0.0, %v280
    %v282 = vpop.f32.mrb[0].mxu0
    %v283 = vadd.f32 0.0, %v282
    %v284 = vpop.f32.mrb[0].mxu0
    %v285 = vadd.f32 0.0, %v284
    %286 = vdwg.mxu0
    %v287 = vadd.f32 %v36, %v279
    %v288 = vadd.f32 %v37, %v281
    %v289 = vadd.f32 %v38, %v283
    %v290 = vadd.f32 %v39, %v285
    %291 = vst [vmem:[#allocation2] sm:$0xff] %v287
    %292 = vst [vmem:[#allocation2 + $0x8] sm:$0xff] %v288
    %293 = vst [vmem:[#allocation2 + $0x10] sm:$0xff] %v289
    %294 = vst [vmem:[#allocation2 + $0x18] sm:$0xff] %v290
    // Predicated region
    $region22: #{geglu_pallas.1} parent=1 // pred_check
      %p295 = pneg %p28
    $region23: #{geglu_pallas.1} parent=1 // pred_check_branch
      %297 = sbr.rel (%p295) target = $region25
    $region24: #{geglu_pallas.1} parent=1 // pred_region
      %v298 = vld [vmem:[#allocation2] sm:$0xff]
      %v299 = vld [vmem:[#allocation2 + $0x8] sm:$0xff]
      %v300 = vld [vmem:[#allocation2 + $0x10] sm:$0xff]
      %v301 = vld [vmem:[#allocation2 + $0x18] sm:$0xff]
      %v302 = vld [vmem:[%s2] sm:$0x3]
      %v304 = vlaneseq
      %v305 = vshrl.u32 %v304, 7
      %v306 = vsub.s32 0, %v305
      %v307 = vrot.slane %v302, %v306
      %v308 = vlaneseq
      %v309 = vshrl.u32 %v308, 7
      %v310 = vsub.s32 1, %v309
      %v311 = vrot.slane %v302, %v310
      %v314 = vadd.f32 %v298, %v307
      %v315 = vadd.f32 %v299, %v311
      %v316 = vadd.f32 %v300, %v307
      %v317 = vadd.f32 %v301, %v311
      %v318 = vmul.f32 %v315, 0.5
      %v319 = vmul.f32 %v317, 0.5
      %v320 = vmul.f32 %v315, 0.70710677
      %v321 = vmul.f32 %v317, 0.70710677
      %v322 = verf.f32.pop %v320
      %v323 = verf.f32.pop %v321
      %v324 = vadd.f32 %v322, 1.0
      %v325 = vadd.f32 %v323, 1.0
      %v326 = vmul.f32 %v318, %v324
      %v327 = vmul.f32 %v319, %v325
      %v328 = vmul.f32 %v314, %v326
      %v329 = vmul.f32 %v316, %v327
      %330 = vst [vmem:[%s3] sm:$0xff] %v328
      %331 = vst [vmem:[%s3 + $0x8] sm:$0xff] %v329
    $region25: #{geglu_pallas.1} parent=1 // pred_fallthru
      _
    // Predicated region
    $region26: #{geglu_pallas.1} parent=1 // pred_check
      _
    $region27: #{geglu_pallas.1} parent=1 // pred_check_branch
      %333 = sbr.rel (0) target = $region29
    $region28: #{geglu_pallas.1} parent=1 // pred_region
      _
    $region29: #{geglu_pallas.1} parent=1 // pred_fallthru
      _
    // Predicated region
    $region30: #{geglu_pallas.1} parent=1 // pred_check
      _
    $region31: #{geglu_pallas.1} parent=1 // pred_check_branch
      %335 = sbr.rel (0) target = $region33
    $region32: #{geglu_pallas.1} parent=1 // pred_region
      _
    $region33: #{geglu_pallas.1} parent=1 // pred_fallthru
      _
    %336 = vsyncpa [#allocation4], 1

</llo_original>
